<compile_context>
chip_gen: v6e
topology: v6e:2x2x1
jax: 0.10.0
libtpu: 0.0.40
codegen_flags: <defaults>
</compile_context>

<pallas_src>
import jax
import jax.numpy as jnp
from jax.experimental import pallas as pl
from jax.experimental.pallas import tpu as pltpu


# --------------------------------------------------------------------------- #
# Helpers
# --------------------------------------------------------------------------- #
def _round_up(x, m):
    return ((x + m - 1) // m) * m


def _vmem_capacity_bytes():
    """Per-core VMEM capacity; conservative (v7x, 64 MiB) fallback."""
    try:
        cap = int(getattr(pltpu.get_tpu_info(), "vmem_capacity_bytes", 0))
        if cap > 0:
            return cap
    except Exception:
        pass
    return 64 << 20


# --------------------------------------------------------------------------- #
# Dense path: rewrite the whole slab with large lane-dense blocks
# --------------------------------------------------------------------------- #
def _dense_kernel(params_ref, x_ref, o_ref):
    # params_ref: (TR, 2) int32 [window_start, window_end] (global positions;
    #             start == end means "no masking" for that row).
    # x_ref/o_ref: (TR, TL) waveform block.
    tl = x_ref.shape[1]
    col0 = pl.program_id(1) * tl
    # Subtract the block offset from the (TR, 1) scalars instead of adding it
    # to the full (TR, TL) iota: one less full-tile VALU add per block.
    start = params_ref[:, 0:1] - col0
    end = params_ref[:, 1:2] - col0
    idx = jax.lax.broadcasted_iota(jnp.int32, x_ref.shape, 1)
    x = x_ref[...]
    in_window = (idx >= start) & (idx < end)
    o_ref[...] = jnp.where(in_window, jnp.zeros_like(x), x)


def _dense_call(params2, x2d, row_tile=None, lane_tile=None):
    R, L = x2d.shape
    itemsize = x2d.dtype.itemsize
    # Sublane-packing quantum: 8 rows for f32, 16 for bf16, 32 for int8.
    quantum = max(8, 32 // itemsize)

    # Generation-aware block budget / VMEM ceiling (leave headroom for the
    # compiler's internal scratch; never clamp at the physical capacity).
    vmem_cap = _vmem_capacity_bytes()
    if vmem_cap >= (96 << 20):          # v5e / v6e: 128 MiB physical VMEM
        target_block_bytes = 8 << 20
        vmem_ceiling = 100 << 20
    else:                               # v7x: 64 MiB per TensorCore
        target_block_bytes = 4 << 20
        vmem_ceiling = 52 << 20

    # Row tile: quantum multiple (or the full row axis when R is tiny).
    if R <= quantum:
        tr = R
    else:
        tr = min(row_tile if row_tile is not None else 256, R)
        tr = max(quantum, (tr // quantum) * quantum)

    # Lane tile: multiple of 128, sized from the VMEM block budget.
    if lane_tile is not None:
        tl = lane_tile
    elif L <= 128:
        tl = L
    else:
        tl = target_block_bytes // (tr * itemsize)
        tl = max(128, min((tl // 128) * 128, (L // 128) * 128))

    grid = (pl.cdiv(R, tr), pl.cdiv(L, tl))   # partial tail blocks are masked

    blk_bytes = tr * tl * itemsize
    params_blk_bytes = tr * 128 * 4            # (tr, 2) int32 padded to lanes
    vmem_needed = 4 * blk_bytes + 4 * params_blk_bytes + (2 << 20)
    vmem_limit = int(min(max(vmem_needed, 16 << 20), vmem_ceiling))

    return pl.pallas_call(
        _dense_kernel,
        out_shape=jax.ShapeDtypeStruct((R, L), x2d.dtype),
        grid_spec=pltpu.PrefetchScalarGridSpec(
            num_scalar_prefetch=0,
            grid=grid,
            in_specs=[
                pl.BlockSpec((tr, 2), lambda i, j: (i, 0)),   # [start, end]
                pl.BlockSpec((tr, tl), lambda i, j: (i, j)),  # waveform block
            ],
            out_specs=pl.BlockSpec((tr, tl), lambda i, j: (i, j)),
        ),
        compiler_params=pltpu.CompilerParams(
            dimension_semantics=("parallel", "parallel"),
            vmem_limit_bytes=vmem_limit,
        ),
        cost_estimate=pl.CostEstimate(
            flops=R * L,
            transcendentals=0,
            bytes_accessed=2 * R * L * itemsize + R * 2 * 4,
        ),
    )(params2, x2d)


# --------------------------------------------------------------------------- #
# Windowed in-place path: only rewrite the <= signal_mask_param window per row
# --------------------------------------------------------------------------- #
def _windowed_call(x2d, starts_eff, ends_eff, tlw):
    R, L = x2d.shape
    itemsize = x2d.dtype.itemsize
    nblk = pl.cdiv(L, tlw)

    # Per-row scalars in SMEM via scalar prefetch. Long axis last to minimise
    # SMEM padding ((3, R) pads to [8, round_up(R,128)] words).
    # rows: [window_start, window_end, start_block]; start == end => no mask.
    blk0 = starts_eff // tlw
    params = jnp.concatenate(
        [starts_eff.T, ends_eff.T, blk0.T], axis=0).astype(jnp.int32)  # (3, R)

    # Add a singleton so the row axis is a leading dim and the block's last
    # two dims ((1, tlw)) satisfy the (8, 128)/full-dim tiling rule.
    x3d = x2d.reshape(R, 1, L)

    def block_index(r, j, p_ref):
        # The window (length <= signal_mask_param <= tlw) spans at most two
        # consecutive tlw-blocks; j in {0, 1} picks them (clamped at the end).
        return (r, 0, jnp.minimum(p_ref[2, r] + j, nblk - 1))

    def kernel(p_ref, x_ref, o_ref):
        r = pl.program_id(0)
        j = pl.program_id(1)
        blk = jnp.minimum(p_ref[2, r] + j, nblk - 1)
        col0 = blk * tlw
        start = p_ref[0, r] - col0
        end = p_ref[1, r] - col0
        idx = jax.lax.broadcasted_iota(jnp.int32, x_ref.shape, 2)
        xv = x_ref[...]
        o_ref[...] = jnp.where((idx >= start) & (idx < end),
                               jnp.zeros_like(xv), xv)

    block_spec = pl.BlockSpec((1, 1, tlw), block_index)

    def build(alias_idx):
        return pl.pallas_call(
            kernel,
            out_shape=jax.ShapeDtypeStruct((R, 1, L), x2d.dtype),
            grid_spec=pltpu.PrefetchScalarGridSpec(
                num_scalar_prefetch=1,
                grid=(R, 2),
                in_specs=[block_spec],
                out_specs=block_spec,
            ),
            input_output_aliases={alias_idx: 0},
            compiler_params=pltpu.CompilerParams(
                dimension_semantics=("arbitrary", "arbitrary"),
                vmem_limit_bytes=32 << 20,
            ),
            cost_estimate=pl.CostEstimate(
                flops=R * 2 * tlw,
                transcendentals=0,
                bytes_accessed=R * 4 * tlw * itemsize + params.size * 4,
            ),
        )

    # input_output_aliases indices count all operands passed to the call,
    # including the scalar-prefetch one (params=0, x=1). If this JAX version
    # indexes only the tensor operands, retry with the other convention
    # (the wrong convention always raises, never silently mis-aliases here).
    try:
        out3d = build(1)(params, x3d)
    except Exception:
        out3d = build(0)(params, x3d)

    return out3d.reshape(R, L)


# --------------------------------------------------------------------------- #
# Public wrapper
# --------------------------------------------------------------------------- #
def waveform_augment(x, key, signal_mask_param=200, augment_prob=0.5,
                     mode="auto", row_tile=None, lane_tile=None,
                     windowed_min_length=49152):
    """x: [B, C, L] float. Returns (augmented waveform, (aug, lengths, starts))."""
    B, C, L = x.shape
    assert L + 1 - signal_mask_param > 0, "signal_length must be >= signal_mask_param"
    R = B * C

    # ---- per-(b,c) random scalars (glue; matches torch.rand / torch.randint) ----
    k_aug, k_len, k_start = jax.random.split(key, 3)
    aug = jax.random.uniform(k_aug, (R, 1)) < augment_prob
    lengths = jax.random.randint(k_len, (R, 1), 1, signal_mask_param + 1,
                                 dtype=jnp.int32)
    starts = jax.random.randint(k_start, (R, 1), 0, L + 1 - signal_mask_param,
                                dtype=jnp.int32)

    # Fold the augment flag into the window: non-augmented rows -> empty window.
    starts_eff = jnp.where(aug, starts, 0).astype(jnp.int32)
    ends_eff = jnp.where(aug, starts + lengths, 0).astype(jnp.int32)

    x2d = x.reshape(R, L)

    # Window-block width: multiple of 128, >= signal_mask_param so any window
    # fits in at most two consecutive blocks.
    tlw = _round_up(max(signal_mask_param, 256), 128)
    use_windowed = (mode == "windowed") or (mode == "auto" and L >= windowed_min_length)
    use_windowed = use_windowed and (mode != "dense") and (L >= tlw)

    if use_windowed:
        out2d = _windowed_call(x2d, starts_eff, ends_eff, tlw)
    else:
        params2 = jnp.concatenate([starts_eff, ends_eff], axis=1)   # (R, 2) i32
        out2d = _dense_call(params2, x2d, row_tile=row_tile, lane_tile=lane_tile)

    return out2d.reshape(B, C, L), (aug, lengths, starts)


# --------------------------------------------------------------------------- #
# Pure-JAX reference mirroring the PyTorch forward
# --------------------------------------------------------------------------- #
def _reference(x, aug, lengths, starts):
    B, C, L = x.shape
    rng = jnp.arange(L)[None, None, :]
    s = starts.reshape(B, C, 1)
    m = lengths.reshape(B, C, 1)
    a = aug.reshape(B, C, 1)
    window = (rng < s + m) & (rng >= s)
    mask = (~window).astype(x.dtype)
    mask = jnp.where(a, mask, jnp.ones_like(mask))
    return x * mask


if __name__ == "__main__":
    key = jax.random.PRNGKey(0)

    # ---- test 1: dense path, small shapes, single block ----
    B, C, L = 2, 4, 128
    k_x, k_r, key = jax.random.split(key, 3)
    x = jax.random.normal(k_x, (B, C, L), dtype=jnp.float32)
    out, (aug, lengths, starts) = waveform_augment(x, k_r, signal_mask_param=16)
    out = jax.block_until_ready(out)
    ref = _reference(x, aug, lengths, starts)
    assert out.shape == x.shape and out.dtype == x.dtype
    assert jnp.allclose(out, ref), "dense single-block mismatch"

    # ---- test 2: dense path, cdiv grid with partial tail blocks (L=300) ----
    B2, C2, L2 = 2, 5, 300
    k_x2, k_r2, key = jax.random.split(key, 3)
    x2 = jax.random.normal(k_x2, (B2, C2, L2), dtype=jnp.float32)
    out2, (aug2, l2, s2) = waveform_augment(x2, k_r2, signal_mask_param=32,
                                            row_tile=8, lane_tile=128)
    out2 = jax.block_until_ready(out2)
    ref2 = _reference(x2, aug2, l2, s2)
    assert jnp.allclose(out2, ref2), "dense partial-tail-block mismatch"

    # ---- test 3: windowed in-place path (aliased output + scalar prefetch) ----
    B3, C3, L3 = 2, 2, 2048
    k_x3, k_r3 = jax.random.split(key)
    x3 = jax.random.normal(k_x3, (B3, C3, L3), dtype=jnp.float32)
    x3_saved = x3.copy()   # keep a copy in case the aliased buffer is donated
    out3, (aug3, l3, s3) = waveform_augment(x3, k_r3, signal_mask_param=200,
                                            mode="windowed")
    out3 = jax.block_until_ready(out3)
    ref3 = _reference(x3_saved, aug3, l3, s3)
    assert jnp.allclose(out3, ref3), "windowed in-place path mismatch"

    print("KERNEL_OK")
</pallas_src>

<mosaic_0001>
module attributes {stable_mosaic.version = 11 : i64} {
  func.func @_dense_kernel(%arg0: i32, %arg1: i32, %arg2: memref<8x2xi32, #tpu.memory_space<vmem>>, %arg3: memref<8x128xf32, #tpu.memory_space<vmem>>, %arg4: memref<8x128xf32, #tpu.memory_space<vmem>>) attributes {dimension_semantics = [#tpu.dimension_semantics<parallel>, #tpu.dimension_semantics<parallel>], iteration_bounds = array<i64: 1, 1>, scalar_prefetch = 0 : i64, scratch_operands = 0 : i64, tpu.core_type = #tpu.core_type<tc>, window_params = [{transform_indices = @transform_0, window_bounds = array<i64: 8, 2>}, {transform_indices = @transform_1, window_bounds = array<i64: 8, 128>}, {transform_indices = @transform_2, window_bounds = array<i64: 8, 128>}]} {
    %c128_i32 = arith.constant 128 : i32
    %0 = arith.muli %arg1, %c128_i32 : i32
    %c0 = arith.constant 0 : index
    %c0_0 = arith.constant 0 : index
    %1 = vector.load %arg2[%c0, %c0_0] : memref<8x2xi32, #tpu.memory_space<vmem>>, vector<8x1xi32>
    %2 = vector.broadcast %0 : i32 to vector<8x1xi32>
    %3 = arith.subi %1, %2 : vector<8x1xi32>
    %c0_1 = arith.constant 0 : index
    %c1 = arith.constant 1 : index
    %4 = vector.load %arg2[%c0_1, %c1] : memref<8x2xi32, #tpu.memory_space<vmem>>, vector<8x1xi32>
    %5 = vector.broadcast %0 : i32 to vector<8x1xi32>
    %6 = arith.subi %4, %5 : vector<8x1xi32>
    %7 = tpu.iota {dimensions = array<i32: 1>} : vector<8x128xi32>
    %c0_2 = arith.constant 0 : index
    %c0_3 = arith.constant 0 : index
    %8 = vector.load %arg3[%c0_2, %c0_3] : memref<8x128xf32, #tpu.memory_space<vmem>>, vector<8x128xf32>
    %9 = vector.broadcast %3 : vector<8x1xi32> to vector<8x128xi32>
    %10 = arith.cmpi sge, %7, %9 : vector<8x128xi32>
    %11 = vector.broadcast %6 : vector<8x1xi32> to vector<8x128xi32>
    %12 = arith.cmpi slt, %7, %11 : vector<8x128xi32>
    %13 = arith.andi %10, %12 : vector<8x128xi1>
    %cst = arith.constant 0.000000e+00 : f32
    %14 = vector.broadcast %cst : f32 to vector<8x128xf32>
    %15 = arith.select %13, %14, %8 : vector<8x128xi1>, vector<8x128xf32>
    %c0_4 = arith.constant 0 : index
    %c0_5 = arith.constant 0 : index
    %16 = vector.load %arg4[%c0_4, %c0_5] : memref<8x128xf32, #tpu.memory_space<vmem>>, vector<8x128xf32>
    tpu.vector_store %arg4[%c0_4, %c0_5], %15 {strides = array<i32>} : memref<8x128xf32, #tpu.memory_space<vmem>>, vector<8x128xf32>,
    return
  }
  func.func @transform_0(%arg0: i32, %arg1: i32) -> (i32, i32) {
    %c0_i32 = arith.constant 0 : i32
    %c0_i32_0 = arith.constant 0 : i32
    return %arg0, %c0_i32 : i32, i32
  }
  func.func @transform_1(%arg0: i32, %arg1: i32) -> (i32, i32) {
    %c0_i32 = arith.constant 0 : i32
    return %arg0, %arg1 : i32, i32
  }
  func.func @transform_2(%arg0: i32, %arg1: i32) -> (i32, i32) {
    %c0_i32 = arith.constant 0 : i32
    return %arg0, %arg1 : i32, i32
  }
}

</mosaic_0001>

<llo_original>
// kernel: tpu_custom_call.1
$region0: #{tpu_custom_call.1}
  #allocation0 [shape = 'u32[]', space=smem, size = 0x4, offset = 0x4, fixed_abs, tag = 'smem constant byte address 0x4 - core index']
  #allocation1 [shape = 'u32[144,128]{1,0:T(1,128)}', space=vmem, size = 0x12000, scoped, tag = 'internal scratch']
  %s0 = inlined_call_operand.vmem [shape: s32[8,2], index: 0, kind: input, shape index: {}]
  %s1 = inlined_call_operand.vmem [shape: f32[8,128], index: 1, kind: input, shape index: {}]
  %s2 = inlined_call_operand.hbm [shape: f32[8,128], index: 2, kind: output, shape index: {}]
  %s3 = sld [smem:[#allocation0]]
  $region18: #{tpu_custom_call.1} parent=0
    _
  %s5 = ssub.s32 1, %s3
  %s6 = scalar_select 0, %s5, %s3
  $region1: #{tpu_custom_call.1} parent=0
    #allocation2 [shape = 'u8[4096]{0}', space=vmem, size = 0x1000, scoped, tag = 'output window, operand 0, single buffered']
    #allocation3 [shape = 's32[1]{0}', space=sflag, size = 0x4, scoped, tag = 'scoped memory for tpu_custom_call.1']
    %7 = vsyncpa [#allocation3], 0
    // Predicated region
    $region2: #{tpu_custom_call.1} parent=1 // pred_check
      _
    $region3: #{tpu_custom_call.1} parent=1 // pred_check_branch
      %9 = sbr.rel (0) target = $region5
    $region4: #{tpu_custom_call.1} parent=1 // pred_region
      _
    $region5: #{tpu_custom_call.1} parent=1 // pred_fallthru
      _
    // Predicated region
    $region6: #{tpu_custom_call.1} parent=1 // pred_check
      _
    $region7: #{tpu_custom_call.1} parent=1 // pred_check_branch
      %11 = sbr.rel (0) target = $region9
    $region8: #{tpu_custom_call.1} parent=1 // pred_region
      _
    $region9: #{tpu_custom_call.1} parent=1 // pred_fallthru
      _
    %s12 = smul.u32 0, 128
    %v13 = vld [vmem:[%s0] sm:$0xff]
    %v14 = vstv %s12
    %v15 = vsub.s32 %v13, %v14
    %v16 = vlaneseq
    %v17 = vand.u32 %v16, 127
    %v18 = vld [vmem:[%s1] sm:$0xff]
    %19 = vset.pattern.permute.xlu0 0
    %20 = vperm.xlu0 %19, %v15
    %v21 = vpop.permute.xlu0 %20
    %vm22 = vcmp.ge.s32.totalorder %v17, %v21
    %23 = vset.pattern.permute.xlu0 1
    %24 = vperm.xlu0 %23, %v15
    %v25 = vpop.permute.xlu0 %24
    %vm26 = vcmp.lt.s32.totalorder %v17, %v25
    %vm27 = vmand %vm22, %vm26
    %v28 = vsel %vm27, 0.0, %v18
    %29 = vst [vmem:[#allocation2] sm:$0xff] %v28
    // Predicated region
    $region10: #{tpu_custom_call.1} parent=1 // pred_check
      _
    $region11: #{tpu_custom_call.1} parent=1 // pred_check_branch
      %31 = sbr.rel (0) target = $region13
    $region12: #{tpu_custom_call.1} parent=1 // pred_region
      %s33 = ssub.s32 128, 128
      %34 = vsyncadd [#allocation3], %s33
      %s36 = sshll.u32 [#allocation2], 4
      %s37 = int_to_ptr.vmem [resolvable:$true] %s36
      %39 = dma.vmem_to_hbm [thread:$0]  %s37, 128, %s2, [#allocation3]
    $region13: #{tpu_custom_call.1} parent=1 // pred_fallthru
      _
    // Predicated region
    $region14: #{tpu_custom_call.1} parent=1 // pred_check
      _
    $region15: #{tpu_custom_call.1} parent=1 // pred_check_branch
      %41 = sbr.rel (0) target = $region17
    $region16: #{tpu_custom_call.1} parent=1 // pred_region
      %42 = dma.done [#allocation3], 128
    $region17: #{tpu_custom_call.1} parent=1 // pred_fallthru
      _
    %43 = vsyncpa [#allocation3], 1

</llo_original>
